<compile_context>
chip_gen: v5e
topology: v5e:2x2
jax: 0.10.0
libtpu: 0.0.40
codegen_flags: <defaults>
</compile_context>

<pallas_src>
import jax
import jax.numpy as jnp
from jax.experimental import pallas as pl
from jax.experimental.pallas import tpu as pltpu

_LANE = 128


def _round_up(n, m):
    return (n + m - 1) // m * m


def _mm_classifier_kernel(x_ref, w2_ref, b2_ref, wc_ref, bc_ref, o_ref):
    # logits = classifier(relu(fc2(x)))  — bf16 operands, f32 accumulation.
    x = x_ref[...].astype(jnp.bfloat16)                               # cast in-kernel (VPU), no extra HBM pass
    h2 = jnp.dot(x, w2_ref[...], preferred_element_type=jnp.float32)  # [TB, 128] f32
    h2 = jnp.maximum(h2 + b2_ref[...], 0.0)                           # bias + relu2 (dropout2 = identity)
    logits = jnp.dot(h2.astype(jnp.bfloat16), wc_ref[...],
                     preferred_element_type=jnp.float32)              # [TB, Cp] f32
    o_ref[...] = (logits + bc_ref[...]).astype(o_ref.dtype)           # lane-dense bf16 store


def multimodal_classifier_forward(x, params, *, num_classes, block_b=2048):
    """x: [B, 256] float32.  Returns [B, num_classes] float32 logits."""
    B, D = x.shape
    assert D == 256, "fc2.in_features == 256 requires input_dim == 256"
    w2, b2, wc, bc = params["w2"], params["b2"], params["wc"], params["bc"]
    Cp = wc.shape[1]  # classifier output, lane-padded to a multiple of 128

    # Pad batch only to the 8-row sublane multiple (<= 7 junk rows, sliced off).
    B8 = _round_up(B, 8)
    if B8 != B:
        x = jnp.pad(x, ((0, B8 - B), (0, 0)))

    # Batch tile: big enough to amortize the ~0.35 us per-step overhead, but
    # keep >= 2 grid steps once the batch is large enough so both v7x
    # TensorCores get work.  Last block may be partial (Pallas masks it).
    if B8 >= 256:
        TB = min(block_b, _round_up(pl.cdiv(B8, 2), 128))
    else:
        TB = B8
    grid = pl.cdiv(B8, TB)

    flops = 2 * B8 * (256 * 128 + 128 * Cp)
    bytes_accessed = (B8 * 256 * 4            # x (f32, read once)
                      + w2.size * 2 + wc.size * 2
                      + b2.size * 4 + bc.size * 4
                      + B8 * Cp * 2)          # out (bf16)

    out = pl.pallas_call(
        _mm_classifier_kernel,
        out_shape=jax.ShapeDtypeStruct((B8, Cp), jnp.bfloat16),
        grid_spec=pltpu.PrefetchScalarGridSpec(
            num_scalar_prefetch=0,
            grid=(grid,),
            in_specs=[
                pl.BlockSpec((TB, 256), lambda i: (i, 0)),    # x tile (f32, cast in kernel)
                pl.BlockSpec((256, 128), lambda i: (0, 0)),   # w2 (resident, bf16)
                pl.BlockSpec((1, 128), lambda i: (0, 0)),     # b2 (f32)
                pl.BlockSpec((128, Cp), lambda i: (0, 0)),    # wc (resident, bf16, padded)
                pl.BlockSpec((1, Cp), lambda i: (0, 0)),      # bc (f32, padded)
            ],
            out_specs=pl.BlockSpec((TB, Cp), lambda i: (i, 0)),
        ),
        compiler_params=pltpu.CompilerParams(
            dimension_semantics=("parallel",)),
        cost_estimate=pl.CostEstimate(
            flops=flops, transcendentals=0, bytes_accessed=bytes_accessed),
    )(x, w2, b2, wc, bc)

    # Slice off lane/batch padding; return f32 logits (bf16 halves slice traffic).
    return out[:B, :num_classes].astype(jnp.float32)


def init_params(key, input_dim, num_classes):
    """nn.Linear-style init U(-1/sqrt(fan_in), 1/sqrt(fan_in)).
    Weights stored pre-transposed [in, out] in bf16; biases f32.
    classifier weight/bias zero-padded to a 128-lane multiple."""
    assert input_dim == 256

    def linear(k, fan_in, fan_out):
        kw, kb = jax.random.split(k)
        bound = 1.0 / jnp.sqrt(fan_in)
        w = jax.random.uniform(kw, (fan_in, fan_out), jnp.float32, -bound, bound)
        b = jax.random.uniform(kb, (1, fan_out), jnp.float32, -bound, bound)
        return w, b

    k2, k4 = jax.random.split(key, 2)
    w2, b2 = linear(k2, 256, 128)            # fc2
    wc, bc = linear(k4, 128, num_classes)    # classifier

    Cp = _round_up(num_classes, _LANE)
    wc_p = jnp.zeros((128, Cp), jnp.float32).at[:, :num_classes].set(wc)
    bc_p = jnp.zeros((1, Cp), jnp.float32).at[:, :num_classes].set(bc)

    return dict(
        w2=w2.astype(jnp.bfloat16), b2=b2,
        wc=wc_p.astype(jnp.bfloat16), bc=bc_p,
    )


def _reference(x, p, num_classes):
    """Pure-JAX reference of the live PyTorch path, same bf16 rounding points."""
    xb = x.astype(jnp.bfloat16).astype(jnp.float32)
    w2 = p["w2"].astype(jnp.float32)
    wc = p["wc"].astype(jnp.float32)
    h2 = jnp.maximum(xb @ w2 + p["b2"], 0.0)
    h2 = h2.astype(jnp.bfloat16).astype(jnp.float32)
    logits = (h2 @ wc + p["bc"]).astype(jnp.bfloat16).astype(jnp.float32)
    return logits[:, :num_classes]


if __name__ == "__main__":
    B, INPUT_DIM, NUM_CLASSES = 8, 256, 10   # input_dim must be 256 (fc2.in_features)
    key = jax.random.PRNGKey(0)
    kx, kp = jax.random.split(key)
    x = jax.random.normal(kx, (B, INPUT_DIM), jnp.float32)
    params = init_params(kp, INPUT_DIM, NUM_CLASSES)

    fwd = jax.jit(lambda xx: multimodal_classifier_forward(
        xx, params, num_classes=NUM_CLASSES))
    logits = jax.block_until_ready(fwd(x))

    ref = _reference(x, params, NUM_CLASSES)
    assert logits.shape == (B, NUM_CLASSES)
    # Tolerance = ~1 bf16 ulp of the final logits (both paths round the output).
    assert jnp.allclose(logits, ref, atol=2e-2, rtol=2e-2), "mismatch vs reference"
    print("KERNEL_OK")
</pallas_src>

<mosaic_0001>
module attributes {stable_mosaic.version = 11 : i64} {
  func.func @_mm_classifier_kernel(%arg0: i32, %arg1: memref<8x256xf32, #tpu.memory_space<vmem>>, %arg2: memref<256x128xbf16, #tpu.memory_space<vmem>>, %arg3: memref<1x128xf32, #tpu.memory_space<vmem>>, %arg4: memref<128x128xbf16, #tpu.memory_space<vmem>>, %arg5: memref<1x128xf32, #tpu.memory_space<vmem>>, %arg6: memref<8x128xbf16, #tpu.memory_space<vmem>>) attributes {dimension_semantics = [#tpu.dimension_semantics<parallel>], iteration_bounds = array<i64: 1>, scalar_prefetch = 0 : i64, scratch_operands = 0 : i64, tpu.core_type = #tpu.core_type<tc>, window_params = [{transform_indices = @transform_0, window_bounds = array<i64: 8, 256>}, {pipeline_mode = #tpu.pipeline_mode<synchronous>, transform_indices = @transform_1, window_bounds = array<i64: 256, 128>}, {pipeline_mode = #tpu.pipeline_mode<synchronous>, transform_indices = @transform_2, window_bounds = array<i64: 1, 128>}, {pipeline_mode = #tpu.pipeline_mode<synchronous>, transform_indices = @transform_3, window_bounds = array<i64: 128, 128>}, {pipeline_mode = #tpu.pipeline_mode<synchronous>, transform_indices = @transform_4, window_bounds = array<i64: 1, 128>}, {transform_indices = @transform_5, window_bounds = array<i64: 8, 128>}]} {
    %c0 = arith.constant 0 : index
    %c0_0 = arith.constant 0 : index
    %0 = vector.load %arg1[%c0, %c0_0] : memref<8x256xf32, #tpu.memory_space<vmem>>, vector<8x256xf32>
    %1 = arith.truncf %0 : vector<8x256xf32> to vector<8x256xbf16>
    %c0_1 = arith.constant 0 : index
    %c0_2 = arith.constant 0 : index
    %2 = vector.load %arg2[%c0_1, %c0_2] : memref<256x128xbf16, #tpu.memory_space<vmem>>, vector<256x128xbf16>
    %cst = arith.constant dense<0.000000e+00> : vector<8x128xf32>
    %3 = tpu.matmul %1, %2, %cst {dimension_numbers = #tpu.dot_dimension_numbers<[1], [0], [0], [1], [0, 0, 1, 1], [], []>} : vector<8x256xbf16>, vector<256x128xbf16>, vector<8x128xf32> -> vector<8x128xf32>
    %c0_3 = arith.constant 0 : index
    %c0_4 = arith.constant 0 : index
    %4 = vector.load %arg3[%c0_3, %c0_4] : memref<1x128xf32, #tpu.memory_space<vmem>>, vector<1x128xf32>
    %5 = vector.broadcast %4 : vector<1x128xf32> to vector<8x128xf32>
    %6 = arith.addf %3, %5 : vector<8x128xf32>
    %cst_5 = arith.constant 0.000000e+00 : f32
    %7 = vector.broadcast %cst_5 : f32 to vector<8x128xf32>
    %8 = arith.maximumf %6, %7 : vector<8x128xf32>
    %9 = arith.truncf %8 : vector<8x128xf32> to vector<8x128xbf16>
    %c0_6 = arith.constant 0 : index
    %c0_7 = arith.constant 0 : index
    %10 = vector.load %arg4[%c0_6, %c0_7] : memref<128x128xbf16, #tpu.memory_space<vmem>>, vector<128x128xbf16>
    %cst_8 = arith.constant dense<0.000000e+00> : vector<8x128xf32>
    %11 = tpu.matmul %9, %10, %cst_8 {dimension_numbers = #tpu.dot_dimension_numbers<[1], [0], [0], [1], [0, 0, 1, 1], [], []>} : vector<8x128xbf16>, vector<128x128xbf16>, vector<8x128xf32> -> vector<8x128xf32>
    %c0_9 = arith.constant 0 : index
    %c0_10 = arith.constant 0 : index
    %12 = vector.load %arg5[%c0_9, %c0_10] : memref<1x128xf32, #tpu.memory_space<vmem>>, vector<1x128xf32>
    %13 = vector.broadcast %12 : vector<1x128xf32> to vector<8x128xf32>
    %14 = arith.addf %11, %13 : vector<8x128xf32>
    %15 = arith.truncf %14 : vector<8x128xf32> to vector<8x128xbf16>
    %c0_11 = arith.constant 0 : index
    %c0_12 = arith.constant 0 : index
    %16 = vector.load %arg6[%c0_11, %c0_12] : memref<8x128xbf16, #tpu.memory_space<vmem>>, vector<8x128xbf16>
    tpu.vector_store %arg6[%c0_11, %c0_12], %15 {strides = array<i32>} : memref<8x128xbf16, #tpu.memory_space<vmem>>, vector<8x128xbf16>,
    return
  }
  func.func @transform_0(%arg0: i32) -> (i32, i32) {
    %c0_i32 = arith.constant 0 : i32
    %c0_i32_0 = arith.constant 0 : i32
    return %arg0, %c0_i32 : i32, i32
  }
  func.func @transform_1(%arg0: i32) -> (i32, i32) {
    %c0_i32 = arith.constant 0 : i32
    %c0_i32_0 = arith.constant 0 : i32
    %c0_i32_1 = arith.constant 0 : i32
    return %c0_i32, %c0_i32_0 : i32, i32
  }
  func.func @transform_2(%arg0: i32) -> (i32, i32) {
    %c0_i32 = arith.constant 0 : i32
    %c0_i32_0 = arith.constant 0 : i32
    %c0_i32_1 = arith.constant 0 : i32
    return %c0_i32, %c0_i32_0 : i32, i32
  }
  func.func @transform_3(%arg0: i32) -> (i32, i32) {
    %c0_i32 = arith.constant 0 : i32
    %c0_i32_0 = arith.constant 0 : i32
    %c0_i32_1 = arith.constant 0 : i32
    return %c0_i32, %c0_i32_0 : i32, i32
  }
  func.func @transform_4(%arg0: i32) -> (i32, i32) {
    %c0_i32 = arith.constant 0 : i32
    %c0_i32_0 = arith.constant 0 : i32
    %c0_i32_1 = arith.constant 0 : i32
    return %c0_i32, %c0_i32_0 : i32, i32
  }
  func.func @transform_5(%arg0: i32) -> (i32, i32) {
    %c0_i32 = arith.constant 0 : i32
    %c0_i32_0 = arith.constant 0 : i32
    return %arg0, %c0_i32 : i32, i32
  }
}

</mosaic_0001>

<llo_original>
// kernel: _lambda_.1
$region0: #{_lambda_.1}
  #allocation0 [shape = 'u32[]', space=smem, size = 0x4, offset = 0x4, fixed_abs, tag = 'smem constant byte address 0x4 - core index']
  #allocation1 [shape = 'u32[72,128]{1,0:T(1,128)}', space=vmem, size = 0x9000, scoped, tag = 'internal scratch']
  %s0 = inlined_call_operand.hbm [shape: f32[8,256], index: 0, kind: input, shape index: {}]
  %s1 = inlined_call_operand.hbm [shape: bf16[256,128], index: 1, kind: input, shape index: {}]
  %s2 = inlined_call_operand.hbm [shape: f32[1,128], index: 2, kind: input, shape index: {}]
  %s3 = inlined_call_operand.hbm [shape: bf16[128,128], index: 3, kind: input, shape index: {}]
  %s4 = inlined_call_operand.vmem [shape: f32[1,128], index: 4, kind: input, shape index: {}]
  %s5 = inlined_call_operand.vmem [shape: bf16[8,128], index: 5, kind: output, shape index: {}]
  %s6 = sld [smem:[#allocation0]]
  $region46: #{_lambda_.1} parent=0
    _
  %s8 = ssub.s32 1, %s6
  %s9 = scalar_select 0, %s8, %s6
  $region1: #{_lambda_.1} parent=0
    #allocation2 [shape = 'u8[8192]{0}', space=vmem, size = 0x2000, scoped, tag = 'input window, operand 0, single buffered']
    #allocation3 [shape = 's32[1]{0}', space=sflag, size = 0x4, scoped, tag = 'scoped memory for _lambda_.1']
    #allocation4 [shape = 'u8[65536]{0}', space=vmem, size = 0x10000, scoped, tag = 'input window, operand 1, single buffered']
    #allocation5 [shape = 's32[1]{0}', space=sflag, size = 0x4, scoped, tag = 'scoped memory for _lambda_.1']
    #allocation6 [shape = 'u8[512]{0}', space=vmem, size = 0x400, scoped, tag = 'input window, operand 2, single buffered']
    #allocation7 [shape = 'u8[32768]{0}', space=vmem, size = 0x8000, scoped, tag = 'input window, operand 3, single buffered']
    #allocation8 [shape = 's32[1]{0}', space=sflag, size = 0x4, scoped, tag = 'scoped memory for _lambda_.1']
    %10 = vsyncpa [#allocation3], 0
    %11 = vsyncpa [#allocation5], 0
    %12 = vsyncpa [#allocation8], 0
    // Predicated region
    $region2: #{_lambda_.1} parent=1 // pred_check
      _
    $region3: #{_lambda_.1} parent=1 // pred_check_branch
      %14 = sbr.rel (0) target = $region5
    $region4: #{_lambda_.1} parent=1 // pred_region
      %16 = vsyncadd [#allocation3], 0
      %s18 = sshll.u32 %s0, 4
      %s19 = int_to_ptr.hbm [resolvable:$true] %s18
      %s20 = sshll.u32 [#allocation2], 4
      %s21 = int_to_ptr.vmem [resolvable:$true] %s20
      %23 = dma.hbm_to_vmem [thread:$0]  %s19, 256, %s21, [#allocation3]
    $region5: #{_lambda_.1} parent=1 // pred_fallthru
      _
    // Predicated region
    $region6: #{_lambda_.1} parent=1 // pred_check
      _
    $region7: #{_lambda_.1} parent=1 // pred_check_branch
      %25 = sbr.rel (0) target = $region9
    $region8: #{_lambda_.1} parent=1 // pred_region
      %27 = vsyncadd [#allocation5], 0
      %s28 = sshll.u32 %s1, 4
      %s29 = int_to_ptr.hbm [resolvable:$true] %s28
      %s30 = sshll.u32 [#allocation4], 4
      %s31 = int_to_ptr.vmem [resolvable:$true] %s30
      %36 = dma.hbm_to_vmem [thread:$0]  %s29, 2048, %s31, [#allocation5], 64, 64, 4
    $region9: #{_lambda_.1} parent=1 // pred_fallthru
      _
    // Predicated region
    $region10: #{_lambda_.1} parent=1 // pred_check
      _
    $region11: #{_lambda_.1} parent=1 // pred_check_branch
      %38 = sbr.rel (0) target = $region13
    $region12: #{_lambda_.1} parent=1 // pred_region
      %40 = vsyncadd [#allocation5], 0
      %s42 = sshll.u32 %s2, 4
      %s43 = int_to_ptr.hbm [resolvable:$true] %s42
      %s44 = sshll.u32 [#allocation6], 4
      %s45 = int_to_ptr.vmem [resolvable:$true] %s44
      %47 = dma.hbm_to_vmem [thread:$0]  %s43, 16, %s45, [#allocation5]
    $region13: #{_lambda_.1} parent=1 // pred_fallthru
      _
    // Predicated region
    $region14: #{_lambda_.1} parent=1 // pred_check
      _
    $region15: #{_lambda_.1} parent=1 // pred_check_branch
      %49 = sbr.rel (0) target = $region17
    $region16: #{_lambda_.1} parent=1 // pred_region
      %51 = vsyncadd [#allocation8], 0
      %s52 = sshll.u32 %s3, 4
      %s53 = int_to_ptr.hbm [resolvable:$true] %s52
      %s54 = sshll.u32 [#allocation7], 4
      %s55 = int_to_ptr.vmem [resolvable:$true] %s54
      %60 = dma.hbm_to_vmem [thread:$0]  %s53, 1024, %s55, [#allocation8], 64, 64, 4
    $region17: #{_lambda_.1} parent=1 // pred_fallthru
      _
    // Predicated region
    $region18: #{_lambda_.1} parent=1 // pred_check
      _
    $region19: #{_lambda_.1} parent=1 // pred_check_branch
      %62 = sbr.rel (0) target = $region21
    $region20: #{_lambda_.1} parent=1 // pred_region
      _
    $region21: #{_lambda_.1} parent=1 // pred_fallthru
      _
    // Predicated region
    $region22: #{_lambda_.1} parent=1 // pred_check
      _
    $region23: #{_lambda_.1} parent=1 // pred_check_branch
      %64 = sbr.rel (0) target = $region25
    $region24: #{_lambda_.1} parent=1 // pred_region
      %66 = dma.done [#allocation3], 256
    $region25: #{_lambda_.1} parent=1 // pred_fallthru
      _
    // Predicated region
    $region26: #{_lambda_.1} parent=1 // pred_check
      _
    $region27: #{_lambda_.1} parent=1 // pred_check_branch
      %68 = sbr.rel (0) target = $region29
    $region28: #{_lambda_.1} parent=1 // pred_region
      %70 = dma.done [#allocation5], 2048
    $region29: #{_lambda_.1} parent=1 // pred_fallthru
      _
    // Predicated region
    $region30: #{_lambda_.1} parent=1 // pred_check
      _
    $region31: #{_lambda_.1} parent=1 // pred_check_branch
      %72 = sbr.rel (0) target = $region33
    $region32: #{_lambda_.1} parent=1 // pred_region
      %74 = dma.done [#allocation5], 16
    $region33: #{_lambda_.1} parent=1 // pred_fallthru
      _
    // Predicated region
    $region34: #{_lambda_.1} parent=1 // pred_check
      _
    $region35: #{_lambda_.1} parent=1 // pred_check_branch
      %76 = sbr.rel (0) target = $region37
    $region36: #{_lambda_.1} parent=1 // pred_region
      %78 = dma.done [#allocation8], 1024
    $region37: #{_lambda_.1} parent=1 // pred_fallthru
      _
    %v79 = vld [vmem:[#allocation2] sm:$0xff]
    %v80 = vld [vmem:[#allocation2 + $0x8] sm:$0xff]
    %v81 = vpack.c.bf16 %v79, %v79
    %v82 = vpack.c.bf16 %v80, %v80
    %v83 = vld [vmem:[#allocation4] sm:$0xf]
    %v84 = vld [vmem:[#allocation4 + $0x4] sm:$0xf]
    %v85 = vld [vmem:[#allocation4 + $0x8] sm:$0xf]
    %v86 = vld [vmem:[#allocation4 + $0xc] sm:$0xf]
    %v87 = vld [vmem:[#allocation4 + $0x10] sm:$0xf]
    %v88 = vld [vmem:[#allocation4 + $0x14] sm:$0xf]
    %v89 = vld [vmem:[#allocation4 + $0x18] sm:$0xf]
    %v90 = vld [vmem:[#allocation4 + $0x1c] sm:$0xf]
    %v91 = vld [vmem:[#allocation4 + $0x20] sm:$0xf]
    %v92 = vld [vmem:[#allocation4 + $0x24] sm:$0xf]
    %v93 = vld [vmem:[#allocation4 + $0x28] sm:$0xf]
    %v94 = vld [vmem:[#allocation4 + $0x2c] sm:$0xf]
    %v95 = vld [vmem:[#allocation4 + $0x30] sm:$0xf]
    %v96 = vld [vmem:[#allocation4 + $0x34] sm:$0xf]
    %v97 = vld [vmem:[#allocation4 + $0x38] sm:$0xf]
    %v98 = vld [vmem:[#allocation4 + $0x3c] sm:$0xf]
    %v99 = vld [vmem:[#allocation4 + $0x40] sm:$0xf]
    %v100 = vld [vmem:[#allocation4 + $0x44] sm:$0xf]
    %v101 = vld [vmem:[#allocation4 + $0x48] sm:$0xf]
    %v102 = vld [vmem:[#allocation4 + $0x4c] sm:$0xf]
    %v103 = vld [vmem:[#allocation4 + $0x50] sm:$0xf]
    %v104 = vld [vmem:[#allocation4 + $0x54] sm:$0xf]
    %v105 = vld [vmem:[#allocation4 + $0x58] sm:$0xf]
    %v106 = vld [vmem:[#allocation4 + $0x5c] sm:$0xf]
    %v107 = vld [vmem:[#allocation4 + $0x60] sm:$0xf]
    %v108 = vld [vmem:[#allocation4 + $0x64] sm:$0xf]
    %v109 = vld [vmem:[#allocation4 + $0x68] sm:$0xf]
    %v110 = vld [vmem:[#allocation4 + $0x6c] sm:$0xf]
    %v111 = vld [vmem:[#allocation4 + $0x70] sm:$0xf]
    %v112 = vld [vmem:[#allocation4 + $0x74] sm:$0xf]
    %v113 = vld [vmem:[#allocation4 + $0x78] sm:$0xf]
    %v114 = vld [vmem:[#allocation4 + $0x7c] sm:$0xf]
    %v115 = vld [vmem:[#allocation6] sm:$0x1]
    %v117 = vperm.slane %v115, 0
    %v151 = vunpack.c.l.b16 %v83
    %v152 = vunpack.c.l.b16 %v84
    %v153 = vunpack.c.l.b16 %v85
    %v154 = vunpack.c.l.b16 %v86
    %v155 = vunpack.c.l.b16 %v87
    %v156 = vunpack.c.l.b16 %v88
    %v157 = vunpack.c.l.b16 %v89
    %v158 = vunpack.c.l.b16 %v90
    %v159 = vunpack.c.l.b16 %v91
    %v160 = vunpack.c.l.b16 %v92
    %v161 = vunpack.c.l.b16 %v93
    %v162 = vunpack.c.l.b16 %v94
    %v163 = vunpack.c.l.b16 %v95
    %v164 = vunpack.c.l.b16 %v96
    %v165 = vunpack.c.l.b16 %v97
    %v166 = vunpack.c.l.b16 %v98
    %v167 = vunpack.c.l.b16 %v99
    %v168 = vunpack.c.l.b16 %v100
    %v169 = vunpack.c.l.b16 %v101
    %v170 = vunpack.c.l.b16 %v102
    %v171 = vunpack.c.l.b16 %v103
    %v172 = vunpack.c.l.b16 %v104
    %v173 = vunpack.c.l.b16 %v105
    %v174 = vunpack.c.l.b16 %v106
    %v175 = vunpack.c.l.b16 %v107
    %v176 = vunpack.c.l.b16 %v108
    %v177 = vunpack.c.l.b16 %v109
    %v178 = vunpack.c.l.b16 %v110
    %v179 = vunpack.c.l.b16 %v111
    %v180 = vunpack.c.l.b16 %v112
    %v181 = vunpack.c.l.b16 %v113
    %v182 = vunpack.c.l.b16 %v114
    %v183 = vpack.c.b16 %v152, %v151
    %v184 = vpack.c.b16 %v154, %v153
    %v185 = vpack.c.b16 %v156, %v155
    %v186 = vpack.c.b16 %v158, %v157
    %v187 = vpack.c.b16 %v160, %v159
    %v188 = vpack.c.b16 %v162, %v161
    %v189 = vpack.c.b16 %v164, %v163
    %v190 = vpack.c.b16 %v166, %v165
    %v191 = vpack.c.b16 %v168, %v167
    %v192 = vpack.c.b16 %v170, %v169
    %v193 = vpack.c.b16 %v172, %v171
    %v194 = vpack.c.b16 %v174, %v173
    %v195 = vpack.c.b16 %v176, %v175
    %v196 = vpack.c.b16 %v178, %v177
    %v197 = vpack.c.b16 %v180, %v179
    %v198 = vpack.c.b16 %v182, %v181
    %215 = vmatpush.bf16.msra.mxu0 %v190
    %216 = vmatpush.bf16.msra.mxu0 %v189
    %217 = vmatpush.bf16.msra.mxu0 %v188
    %218 = vmatpush.bf16.msra.mxu0 %v187
    %219 = vmatpush.bf16.msra.mxu0 %v186
    %220 = vmatpush.bf16.msra.mxu0 %v185
    %221 = vmatpush.bf16.msra.mxu0 %v184
    %222 = vmatpush.bf16.msra.mxu0 %v183
    %223 = vmatmul.bf16.gmra.mxu0 %v81
    %v224 = vpop.f32.mrf.mxu0
    %v225 = vadd.f32 %v117, %v224
    %v226 = vpop.f32.mrf.mxu0
    %227 = vdwg.mxu0
    %228 = vmatpush.bf16.msra.mxu0 %v198
    %229 = vmatpush.bf16.msra.mxu0 %v197
    %230 = vmatpush.bf16.msra.mxu0 %v196
    %231 = vmatpush.bf16.msra.mxu0 %v195
    %232 = vmatpush.bf16.msra.mxu0 %v194
    %233 = vmatpush.bf16.msra.mxu0 %v193
    %234 = vmatpush.bf16.msra.mxu0 %v192
    %235 = vmatpush.bf16.msra.mxu0 %v191
    %236 = vmatmul.bf16.gmra.mxu0 %v82
    %v237 = vpop.f32.mrf.mxu0
    %v238 = vadd.f32 %v225, %v237
    %v239 = vpop.f32.mrf.mxu0
    %240 = vdwg.mxu0
    %v241 = vmax.f32 %v238, 0.0
    %v242 = vpack.c.bf16 %v241, %v241
    %v243 = vld [vmem:[#allocation7] sm:$0xf]
    %v244 = vld [vmem:[#allocation7 + $0x4] sm:$0xf]
    %v245 = vld [vmem:[#allocation7 + $0x8] sm:$0xf]
    %v246 = vld [vmem:[#allocation7 + $0xc] sm:$0xf]
    %v247 = vld [vmem:[#allocation7 + $0x10] sm:$0xf]
    %v248 = vld [vmem:[#allocation7 + $0x14] sm:$0xf]
    %v249 = vld [vmem:[#allocation7 + $0x18] sm:$0xf]
    %v250 = vld [vmem:[#allocation7 + $0x1c] sm:$0xf]
    %v251 = vld [vmem:[#allocation7 + $0x20] sm:$0xf]
    %v252 = vld [vmem:[#allocation7 + $0x24] sm:$0xf]
    %v253 = vld [vmem:[#allocation7 + $0x28] sm:$0xf]
    %v254 = vld [vmem:[#allocation7 + $0x2c] sm:$0xf]
    %v255 = vld [vmem:[#allocation7 + $0x30] sm:$0xf]
    %v256 = vld [vmem:[#allocation7 + $0x34] sm:$0xf]
    %v257 = vld [vmem:[#allocation7 + $0x38] sm:$0xf]
    %v258 = vld [vmem:[#allocation7 + $0x3c] sm:$0xf]
    %v259 = vld [vmem:[%s4] sm:$0x1]
    %v261 = vperm.slane %v259, 0
    %v279 = vunpack.c.l.b16 %v243
    %v280 = vunpack.c.l.b16 %v244
    %v281 = vunpack.c.l.b16 %v245
    %v282 = vunpack.c.l.b16 %v246
    %v283 = vunpack.c.l.b16 %v247
    %v284 = vunpack.c.l.b16 %v248
    %v285 = vunpack.c.l.b16 %v249
    %v286 = vunpack.c.l.b16 %v250
    %v287 = vunpack.c.l.b16 %v251
    %v288 = vunpack.c.l.b16 %v252
    %v289 = vunpack.c.l.b16 %v253
    %v290 = vunpack.c.l.b16 %v254
    %v291 = vunpack.c.l.b16 %v255
    %v292 = vunpack.c.l.b16 %v256
    %v293 = vunpack.c.l.b16 %v257
    %v294 = vunpack.c.l.b16 %v258
    %v295 = vpack.c.b16 %v280, %v279
    %v296 = vpack.c.b16 %v282, %v281
    %v297 = vpack.c.b16 %v284, %v283
    %v298 = vpack.c.b16 %v286, %v285
    %v299 = vpack.c.b16 %v288, %v287
    %v300 = vpack.c.b16 %v290, %v289
    %v301 = vpack.c.b16 %v292, %v291
    %v302 = vpack.c.b16 %v294, %v293
    %311 = vmatpush.bf16.msra.mxu0 %v302
    %312 = vmatpush.bf16.msra.mxu0 %v301
    %313 = vmatpush.bf16.msra.mxu0 %v300
    %314 = vmatpush.bf16.msra.mxu0 %v299
    %315 = vmatpush.bf16.msra.mxu0 %v298
    %316 = vmatpush.bf16.msra.mxu0 %v297
    %317 = vmatpush.bf16.msra.mxu0 %v296
    %318 = vmatpush.bf16.msra.mxu0 %v295
    %319 = vmatmul.bf16.gmra.mxu0 %v242
    %v320 = vpop.f32.mrf.mxu0
    %v321 = vadd.f32 %v261, %v320
    %v322 = vpop.f32.mrf.mxu0
    %323 = vdwg.mxu0
    %v324 = vpack.c.bf16 %v321, %v321
    %325 = vst [vmem:[%s5] sm:$0xf] %v324
    // Predicated region
    $region38: #{_lambda_.1} parent=1 // pred_check
      _
    $region39: #{_lambda_.1} parent=1 // pred_check_branch
      %327 = sbr.rel (0) target = $region41
    $region40: #{_lambda_.1} parent=1 // pred_region
      _
    $region41: #{_lambda_.1} parent=1 // pred_fallthru
      _
    // Predicated region
    $region42: #{_lambda_.1} parent=1 // pred_check
      _
    $region43: #{_lambda_.1} parent=1 // pred_check_branch
      %329 = sbr.rel (0) target = $region45
    $region44: #{_lambda_.1} parent=1 // pred_region
      _
    $region45: #{_lambda_.1} parent=1 // pred_fallthru
      _
    %330 = vsyncpa [#allocation3], 1
    %331 = vsyncpa [#allocation5], 1
    %332 = vsyncpa [#allocation8], 1

</llo_original>
